<compile_context>
chip_gen: v7x
topology: tpu7x:2x2x1
jax: 0.10.0
libtpu: 0.0.40
codegen_flags: <defaults>
</compile_context>

<pallas_src>
import functools

import numpy as np

import jax
import jax.numpy as jnp
from jax import lax
from jax.experimental import pallas as pl
from jax.experimental.pallas import tpu as pltpu

LANE = 128
SUBLANE = 8


def _round_up(x, m):
    return ((x + m - 1) // m) * m


# ----------------------------------------------------------------------------
# Fused kernel: shared MLP + all heads + single-pass segmented softmax
# ----------------------------------------------------------------------------
def _fused_forward_kernel(z_ref, p_ref, out_ref, *, d_pad, width, boundaries, total):
    r_w1 = SUBLANE                    # start row of W1^T
    r_w2 = r_w1 + d_pad               # start row of W2^T
    r_wh = r_w2 + width               # start row of packed head weights
    r_s = r_wh + width                # start row of block-diagonal segment matrix

    z = z_ref[...]                    # (bB, Dp)
    b1 = p_ref[0:1, :]                # (1, W)
    b2 = p_ref[1:2, :]
    bh = p_ref[2:3, :]
    pad_ind = p_ref[3:4, :]           # 1.0 on padded lanes, 0.0 on real classes

    # Shared MLP: Linear -> ReLU -> (Dropout p=0) -> Linear -> ReLU -> (Dropout p=0)
    h = jnp.dot(z, p_ref[r_w1:r_w2, :], preferred_element_type=jnp.float32)
    h = jnp.maximum(h + b1, 0.0)
    h = jnp.dot(h, p_ref[r_w2:r_wh, :], preferred_element_type=jnp.float32)
    h = jnp.maximum(h + b2, 0.0)

    # All classification heads in one lane-dense MXU matmul.
    logits = jnp.dot(h, p_ref[r_wh:r_s, :], preferred_element_type=jnp.float32) + bh

    # --- single-pass segmented softmax --------------------------------------
    lane = lax.broadcasted_iota(jnp.int32, (1, width), 1)

    # Per-lane segment max (exact per-head max; num_heads is tiny and static).
    m_lane = jnp.zeros_like(logits)
    for (s, e) in boundaries:
        seg_mask = (lane >= s) & (lane < e)
        seg_max = jnp.max(jnp.where(seg_mask, logits, -jnp.inf),
                          axis=-1, keepdims=True)
        m_lane = jnp.where(seg_mask, seg_max, m_lane)

    valid = lane < total
    # ONE exp over the whole tile; padded lanes zeroed afterwards.
    e = jnp.where(valid, jnp.exp(logits - m_lane), 0.0)

    # Per-lane segment sums via ONE matmul against the block-diagonal ones matrix.
    seg_sum = jnp.dot(e, p_ref[r_s:r_s + width, :],
                      preferred_element_type=jnp.float32)
    denom = seg_sum + pad_ind         # padded lanes: 0/1 -> exactly 0
    out_ref[...] = (e * pl.reciprocal(denom, approx=False)).astype(out_ref.dtype)


# ----------------------------------------------------------------------------
# One-time parameter packing: everything into one lane-dense f32 slab
# ----------------------------------------------------------------------------
def pack_params(params, num_classes_list):
    num_classes_list = [int(c) for c in num_classes_list]
    assert all(c > 0 for c in num_classes_list), "empty heads are not supported"

    w1 = np.asarray(params["w1"], np.float32)     # (H, D)
    b1 = np.asarray(params["b1"], np.float32)     # (H,)
    w2 = np.asarray(params["w2"], np.float32)     # (H, H)
    b2 = np.asarray(params["b2"], np.float32)     # (H,)
    hidden, core_dim = w1.shape
    total = sum(num_classes_list)

    d_pad = _round_up(core_dim, SUBLANE)
    width = _round_up(max(hidden, total), LANE)

    r_w1 = SUBLANE
    r_w2 = r_w1 + d_pad
    r_wh = r_w2 + width
    r_s = r_wh + width

    slab = np.zeros((r_s + width, width), np.float32)

    # bias / constant rows
    slab[0, :hidden] = b1
    slab[1, :hidden] = b2
    slab[3, total:] = 1.0                         # padded-lane indicator

    # weights (pre-transposed, zero-padded)
    slab[r_w1:r_w1 + core_dim, :hidden] = w1.T
    slab[r_w2:r_w2 + hidden, :hidden] = w2.T

    boundaries = []
    start = 0
    for (wh, bh), nc in zip(params["heads"], num_classes_list):
        wh = np.asarray(wh, np.float32)           # (nc, H)
        bh = np.asarray(bh, np.float32)           # (nc,)
        slab[r_wh:r_wh + hidden, start:start + nc] = wh.T
        slab[2, start:start + nc] = bh
        # block-diagonal ones: segment-sum matrix for the softmax denominator
        slab[r_s + start:r_s + start + nc, start:start + nc] = 1.0
        boundaries.append((start, start + nc))
        start += nc

    meta = dict(core_dim=core_dim, d_pad=d_pad, hidden=hidden, width=width,
                total=total, boundaries=tuple(boundaries))
    return jnp.asarray(slab), meta


# ----------------------------------------------------------------------------
# Forward factory: one jit boundary wrapping one pallas_call, lane-dense output
# ----------------------------------------------------------------------------
def make_forward(meta, *, max_block_b=256):
    d_pad = meta["d_pad"]
    width = meta["width"]
    kernel = functools.partial(
        _fused_forward_kernel, d_pad=d_pad, width=width,
        boundaries=meta["boundaries"], total=meta["total"])

    @jax.jit
    def forward(z_core, slab):
        b, d = z_core.shape
        if d != d_pad:                             # sublane-align the feature dim
            z_core = jnp.pad(z_core, ((0, 0), (0, d_pad - d)))
        b_pad = _round_up(b, SUBLANE)
        block_b = b_pad if b_pad <= max_block_b else max_block_b
        b_pad = _round_up(b_pad, block_b)
        if b_pad != b:
            z_core = jnp.pad(z_core, ((0, b_pad - b), (0, 0)))
        slab_rows = slab.shape[0]

        out = pl.pallas_call(
            kernel,
            out_shape=jax.ShapeDtypeStruct((b_pad, width), jnp.float32),
            grid=(b_pad // block_b,),
            in_specs=[
                pl.BlockSpec((block_b, d_pad), lambda i: (i, 0)),
                # constant block index -> parameter slab stays resident in VMEM
                pl.BlockSpec((slab_rows, width), lambda i: (0, 0)),
            ],
            out_specs=pl.BlockSpec((block_b, width), lambda i: (i, 0)),
            compiler_params=pltpu.CompilerParams(
                dimension_semantics=("parallel",)),
        )(z_core, slab)

        if b_pad != b:
            out = out[:b]
        return out                                 # lane-dense (B, width) slab

    return forward


def split_heads(out_slab, boundaries):
    """Per-head probability views of the lane-dense output slab."""
    return [out_slab[:, s:e] for (s, e) in boundaries]


# ----------------------------------------------------------------------------
# Deterministic parameter init (shapes follow the module's __init__)
# ----------------------------------------------------------------------------
def init_params(key, core_dim, hidden_dim, num_classes_list):
    ks = jax.random.split(key, 4 + 2 * len(num_classes_list))
    scale = 0.1
    params = {
        "w1": scale * jax.random.normal(ks[0], (hidden_dim, core_dim), jnp.float32),
        "b1": scale * jax.random.normal(ks[1], (hidden_dim,), jnp.float32),
        "w2": scale * jax.random.normal(ks[2], (hidden_dim, hidden_dim), jnp.float32),
        "b2": scale * jax.random.normal(ks[3], (hidden_dim,), jnp.float32),
        "heads": [],
    }
    for i, nc in enumerate(num_classes_list):
        wh = scale * jax.random.normal(ks[4 + 2 * i], (nc, hidden_dim), jnp.float32)
        bh = scale * jax.random.normal(ks[5 + 2 * i], (nc,), jnp.float32)
        params["heads"].append((wh, bh))
    return params


# ----------------------------------------------------------------------------
if __name__ == "__main__":
    B = 8                      # batch
    CORE_DIM = 32              # core_graph_vector_dim
    HIDDEN = 128               # hidden_dim (module default)
    NUM_CLASSES_LIST = [4, 7, 3]
    # NOTE: dropout=0.0 (module default) -> identity; no in-kernel RNG needed.

    key = jax.random.PRNGKey(0)
    k_x, k_p = jax.random.split(key)
    z_core = jax.random.normal(k_x, (B, CORE_DIM), jnp.float32)
    params = init_params(k_p, CORE_DIM, HIDDEN, NUM_CLASSES_LIST)

    slab, meta = pack_params(params, NUM_CLASSES_LIST)    # one-time packing
    forward = make_forward(meta)                          # single fused call

    out_slab = forward(z_core, slab)                      # lane-dense (B, 128)
    jax.block_until_ready(out_slab)

    # pure-JAX reference check
    def ref_forward(z, p):
        h = jnp.maximum(z @ p["w1"].T + p["b1"], 0.0)
        h = jnp.maximum(h @ p["w2"].T + p["b2"], 0.0)
        return [jax.nn.softmax(h @ wh.T + bh, axis=-1) for wh, bh in p["heads"]]

    refs = ref_forward(z_core, params)
    outs = split_heads(out_slab, meta["boundaries"])      # cheap views for check
    for o, r in zip(outs, refs):
        assert o.shape == r.shape and o.dtype == r.dtype
        assert jnp.allclose(o, r, atol=1e-5, rtol=1e-5), \
            float(jnp.max(jnp.abs(o - r)))

    print("KERNEL_OK")
</pallas_src>

<mosaic_0001>
module attributes {stable_mosaic.version = 11 : i64} {
  func.func @_fused_forward_kernel(%arg0: i32, %arg1: memref<8x32xf32, #tpu.memory_space<vmem>>, %arg2: memref<424x128xf32, #tpu.memory_space<vmem>>, %arg3: memref<8x128xf32, #tpu.memory_space<vmem>>) attributes {dimension_semantics = [#tpu.dimension_semantics<parallel>], iteration_bounds = array<i64: 1>, scalar_prefetch = 0 : i64, scratch_operands = 0 : i64, tpu.core_type = #tpu.core_type<tc>, window_params = [{transform_indices = @transform_0, window_bounds = array<i64: 8, 32>}, {pipeline_mode = #tpu.pipeline_mode<synchronous>, transform_indices = @transform_1, window_bounds = array<i64: 424, 128>}, {transform_indices = @transform_2, window_bounds = array<i64: 8, 128>}]} {
    %c0 = arith.constant 0 : index
    %c0_0 = arith.constant 0 : index
    %0 = vector.load %arg1[%c0, %c0_0] : memref<8x32xf32, #tpu.memory_space<vmem>>, vector<8x32xf32>
    %c0_1 = arith.constant 0 : index
    %c0_2 = arith.constant 0 : index
    %1 = vector.load %arg2[%c0_1, %c0_2] : memref<424x128xf32, #tpu.memory_space<vmem>>, vector<1x128xf32>
    %c1 = arith.constant 1 : index
    %c0_3 = arith.constant 0 : index
    %2 = vector.load %arg2[%c1, %c0_3] : memref<424x128xf32, #tpu.memory_space<vmem>>, vector<1x128xf32>
    %c2 = arith.constant 2 : index
    %c0_4 = arith.constant 0 : index
    %3 = vector.load %arg2[%c2, %c0_4] : memref<424x128xf32, #tpu.memory_space<vmem>>, vector<1x128xf32>
    %c3 = arith.constant 3 : index
    %c0_5 = arith.constant 0 : index
    %4 = vector.load %arg2[%c3, %c0_5] : memref<424x128xf32, #tpu.memory_space<vmem>>, vector<1x128xf32>
    %c8 = arith.constant 8 : index
    %c0_6 = arith.constant 0 : index
    %5 = vector.load %arg2[%c8, %c0_6] : memref<424x128xf32, #tpu.memory_space<vmem>>, vector<32x128xf32>
    %cst = arith.constant dense<0.000000e+00> : vector<8x128xf32>
    %6 = tpu.matmul %0, %5, %cst {dimension_numbers = #tpu.dot_dimension_numbers<[1], [0], [0], [1], [0, 0, 1, 1], [], []>} : vector<8x32xf32>, vector<32x128xf32>, vector<8x128xf32> -> vector<8x128xf32>
    %7 = vector.broadcast %1 : vector<1x128xf32> to vector<8x128xf32>
    %8 = arith.addf %6, %7 : vector<8x128xf32>
    %cst_7 = arith.constant 0.000000e+00 : f32
    %9 = vector.broadcast %cst_7 : f32 to vector<8x128xf32>
    %10 = arith.maximumf %8, %9 : vector<8x128xf32>
    %c40 = arith.constant 40 : index
    %c0_8 = arith.constant 0 : index
    %11 = vector.load %arg2[%c40, %c0_8] : memref<424x128xf32, #tpu.memory_space<vmem>>, vector<128x128xf32>
    %cst_9 = arith.constant dense<0.000000e+00> : vector<8x128xf32>
    %12 = tpu.matmul %10, %11, %cst_9 {dimension_numbers = #tpu.dot_dimension_numbers<[1], [0], [0], [1], [0, 0, 1, 1], [], []>} : vector<8x128xf32>, vector<128x128xf32>, vector<8x128xf32> -> vector<8x128xf32>
    %13 = vector.broadcast %2 : vector<1x128xf32> to vector<8x128xf32>
    %14 = arith.addf %12, %13 : vector<8x128xf32>
    %cst_10 = arith.constant 0.000000e+00 : f32
    %15 = vector.broadcast %cst_10 : f32 to vector<8x128xf32>
    %16 = arith.maximumf %14, %15 : vector<8x128xf32>
    %c168 = arith.constant 168 : index
    %c0_11 = arith.constant 0 : index
    %17 = vector.load %arg2[%c168, %c0_11] : memref<424x128xf32, #tpu.memory_space<vmem>>, vector<128x128xf32>
    %cst_12 = arith.constant dense<0.000000e+00> : vector<8x128xf32>
    %18 = tpu.matmul %16, %17, %cst_12 {dimension_numbers = #tpu.dot_dimension_numbers<[1], [0], [0], [1], [0, 0, 1, 1], [], []>} : vector<8x128xf32>, vector<128x128xf32>, vector<8x128xf32> -> vector<8x128xf32>
    %19 = vector.broadcast %3 : vector<1x128xf32> to vector<8x128xf32>
    %20 = arith.addf %18, %19 : vector<8x128xf32>
    %21 = tpu.iota {dimensions = array<i32: 1>} : vector<1x128xi32>
    %cst_13 = arith.constant 0.000000e+00 : f32
    %22 = vector.broadcast %cst_13 : f32 to vector<8x128xf32>
    %c0_i32 = arith.constant 0 : i32
    %23 = vector.broadcast %c0_i32 : i32 to vector<1x128xi32>
    %24 = arith.cmpi sge, %21, %23 : vector<1x128xi32>
    %c4_i32 = arith.constant 4 : i32
    %25 = vector.broadcast %c4_i32 : i32 to vector<1x128xi32>
    %26 = arith.cmpi slt, %21, %25 : vector<1x128xi32>
    %27 = arith.andi %24, %26 : vector<1x128xi1>
    %cst_14 = arith.constant 0xFF800000 : f32
    %28 = vector.shape_cast %27 : vector<1x128xi1> to vector<1x128xi1>
    %29 = vector.broadcast %28 : vector<1x128xi1> to vector<8x128xi1>
    %30 = vector.broadcast %cst_14 : f32 to vector<8x128xf32>
    %31 = arith.select %29, %20, %30 : vector<8x128xi1>, vector<8x128xf32>
    %cst_15 = arith.constant dense<0xFF800000> : vector<8xf32>
    %32 = vector.multi_reduction <maximumf>, %31, %cst_15 [1] : vector<8x128xf32> to vector<8xf32>
    %33 = vector.shape_cast %32 : vector<8xf32> to vector<8x1xf32>
    %34 = vector.shape_cast %27 : vector<1x128xi1> to vector<1x128xi1>
    %35 = vector.broadcast %34 : vector<1x128xi1> to vector<8x128xi1>
    %36 = vector.shape_cast %33 : vector<8x1xf32> to vector<8x1xf32>
    %37 = vector.broadcast %36 : vector<8x1xf32> to vector<8x128xf32>
    %38 = arith.select %35, %37, %22 : vector<8x128xi1>, vector<8x128xf32>
    %c4_i32_16 = arith.constant 4 : i32
    %39 = vector.broadcast %c4_i32_16 : i32 to vector<1x128xi32>
    %40 = arith.cmpi sge, %21, %39 : vector<1x128xi32>
    %c11_i32 = arith.constant 11 : i32
    %41 = vector.broadcast %c11_i32 : i32 to vector<1x128xi32>
    %42 = arith.cmpi slt, %21, %41 : vector<1x128xi32>
    %43 = arith.andi %40, %42 : vector<1x128xi1>
    %cst_17 = arith.constant 0xFF800000 : f32
    %44 = vector.shape_cast %43 : vector<1x128xi1> to vector<1x128xi1>
    %45 = vector.broadcast %44 : vector<1x128xi1> to vector<8x128xi1>
    %46 = vector.broadcast %cst_17 : f32 to vector<8x128xf32>
    %47 = arith.select %45, %20, %46 : vector<8x128xi1>, vector<8x128xf32>
    %cst_18 = arith.constant dense<0xFF800000> : vector<8xf32>
    %48 = vector.multi_reduction <maximumf>, %47, %cst_18 [1] : vector<8x128xf32> to vector<8xf32>
    %49 = vector.shape_cast %48 : vector<8xf32> to vector<8x1xf32>
    %50 = vector.shape_cast %43 : vector<1x128xi1> to vector<1x128xi1>
    %51 = vector.broadcast %50 : vector<1x128xi1> to vector<8x128xi1>
    %52 = vector.shape_cast %49 : vector<8x1xf32> to vector<8x1xf32>
    %53 = vector.broadcast %52 : vector<8x1xf32> to vector<8x128xf32>
    %54 = arith.select %51, %53, %38 : vector<8x128xi1>, vector<8x128xf32>
    %c11_i32_19 = arith.constant 11 : i32
    %55 = vector.broadcast %c11_i32_19 : i32 to vector<1x128xi32>
    %56 = arith.cmpi sge, %21, %55 : vector<1x128xi32>
    %c14_i32 = arith.constant 14 : i32
    %57 = vector.broadcast %c14_i32 : i32 to vector<1x128xi32>
    %58 = arith.cmpi slt, %21, %57 : vector<1x128xi32>
    %59 = arith.andi %56, %58 : vector<1x128xi1>
    %cst_20 = arith.constant 0xFF800000 : f32
    %60 = vector.shape_cast %59 : vector<1x128xi1> to vector<1x128xi1>
    %61 = vector.broadcast %60 : vector<1x128xi1> to vector<8x128xi1>
    %62 = vector.broadcast %cst_20 : f32 to vector<8x128xf32>
    %63 = arith.select %61, %20, %62 : vector<8x128xi1>, vector<8x128xf32>
    %cst_21 = arith.constant dense<0xFF800000> : vector<8xf32>
    %64 = vector.multi_reduction <maximumf>, %63, %cst_21 [1] : vector<8x128xf32> to vector<8xf32>
    %65 = vector.shape_cast %64 : vector<8xf32> to vector<8x1xf32>
    %66 = vector.shape_cast %59 : vector<1x128xi1> to vector<1x128xi1>
    %67 = vector.broadcast %66 : vector<1x128xi1> to vector<8x128xi1>
    %68 = vector.shape_cast %65 : vector<8x1xf32> to vector<8x1xf32>
    %69 = vector.broadcast %68 : vector<8x1xf32> to vector<8x128xf32>
    %70 = arith.select %67, %69, %54 : vector<8x128xi1>, vector<8x128xf32>
    %c14_i32_22 = arith.constant 14 : i32
    %71 = vector.broadcast %c14_i32_22 : i32 to vector<1x128xi32>
    %72 = arith.cmpi slt, %21, %71 : vector<1x128xi32>
    %73 = arith.subf %20, %70 : vector<8x128xf32>
    %74 = math.exp %73 : vector<8x128xf32>
    %cst_23 = arith.constant 0.000000e+00 : f32
    %75 = vector.shape_cast %72 : vector<1x128xi1> to vector<1x128xi1>
    %76 = vector.broadcast %75 : vector<1x128xi1> to vector<8x128xi1>
    %77 = vector.broadcast %cst_23 : f32 to vector<8x128xf32>
    %78 = arith.select %76, %74, %77 : vector<8x128xi1>, vector<8x128xf32>
    %c296 = arith.constant 296 : index
    %c0_24 = arith.constant 0 : index
    %79 = vector.load %arg2[%c296, %c0_24] : memref<424x128xf32, #tpu.memory_space<vmem>>, vector<128x128xf32>
    %cst_25 = arith.constant dense<0.000000e+00> : vector<8x128xf32>
    %80 = tpu.matmul %78, %79, %cst_25 {dimension_numbers = #tpu.dot_dimension_numbers<[1], [0], [0], [1], [0, 0, 1, 1], [], []>} : vector<8x128xf32>, vector<128x128xf32>, vector<8x128xf32> -> vector<8x128xf32>
    %81 = vector.broadcast %4 : vector<1x128xf32> to vector<8x128xf32>
    %82 = arith.addf %80, %81 : vector<8x128xf32>
    %83 = tpu.reciprocal %82 : vector<8x128xf32> -> vector<8x128xf32>
    %84 = arith.mulf %78, %83 : vector<8x128xf32>
    %c0_26 = arith.constant 0 : index
    %c0_27 = arith.constant 0 : index
    %85 = vector.load %arg3[%c0_26, %c0_27] : memref<8x128xf32, #tpu.memory_space<vmem>>, vector<8x128xf32>
    tpu.vector_store %arg3[%c0_26, %c0_27], %84 {strides = array<i32>} : memref<8x128xf32, #tpu.memory_space<vmem>>, vector<8x128xf32>,
    return
  }
  func.func @transform_0(%arg0: i32) -> (i32, i32) {
    %c0_i32 = arith.constant 0 : i32
    %c0_i32_0 = arith.constant 0 : i32
    return %arg0, %c0_i32 : i32, i32
  }
  func.func @transform_1(%arg0: i32) -> (i32, i32) {
    %c0_i32 = arith.constant 0 : i32
    %c0_i32_0 = arith.constant 0 : i32
    %c0_i32_1 = arith.constant 0 : i32
    return %c0_i32, %c0_i32_0 : i32, i32
  }
  func.func @transform_2(%arg0: i32) -> (i32, i32) {
    %c0_i32 = arith.constant 0 : i32
    %c0_i32_0 = arith.constant 0 : i32
    return %arg0, %c0_i32 : i32, i32
  }
}

</mosaic_0001>

<llo_original>
// kernel: forward.1
$region0: #{forward.1}
  #allocation0 [shape = 'u32[]', space=smem, size = 0x4, offset = 0x4, fixed_abs, tag = 'smem constant byte address 0x4 - core index']
  #allocation1 [shape = 'u32[144,128]{1,0:T(1,128)}', space=vmem, size = 0x12000, scoped, tag = 'internal scratch']
  %s0 = inlined_call_operand.hbm [shape: f32[8,32], index: 0, kind: input, shape index: {}]
  %s1 = inlined_call_operand.hbm [shape: f32[424,128], index: 1, kind: input, shape index: {}]
  %s2 = inlined_call_operand.hbm [shape: f32[8,128], index: 2, kind: output, shape index: {}]
  %s3 = sld [smem:[#allocation0]]
  $region26: #{forward.1} parent=0
    _
  %s5 = ssub.s32 1, %s3
  %s6 = scalar_select 0, %s5, %s3
  $region1: #{forward.1} parent=0
    #allocation2 [shape = 'u8[4096]{0}', space=vmem, size = 0x1000, scoped, tag = 'input window, operand 0, single buffered']
    #allocation3 [shape = 's32[1]{0}', space=sflag, size = 0x4, scoped, tag = 'scoped memory for forward.1']
    #allocation4 [shape = 's32[1]{0}', space=sflag, size = 0x4, scoped, tag = 'scoped memory for forward.1']
    #allocation5 [shape = 'u8[217088]{0}', space=vmem, size = 0x35000, scoped, tag = 'input window, operand 1, single buffered']
    #allocation6 [shape = 's32[1]{0}', space=sflag, size = 0x4, scoped, tag = 'scoped memory for forward.1']
    #allocation7 [shape = 'u8[4096]{0}', space=vmem, size = 0x1000, scoped, tag = 'output window, operand 0, single buffered']
    %7 = vsyncpa [#allocation3], 0
    %8 = vsyncpa [#allocation6], 0
    %9 = vsyncpa [#allocation4], 0
    // Predicated region
    $region2: #{forward.1} parent=1 // pred_check
      _
    $region3: #{forward.1} parent=1 // pred_check_branch
      %11 = sbr.rel (0) target = $region5
    $region4: #{forward.1} parent=1 // pred_region
      %s13 = ssub.s32 128, 128
      %14 = vsyncadd [#allocation3], %s13
      %s16 = sshll.u32 [#allocation2], 4
      %s17 = int_to_ptr.vmem [resolvable:$true] %s16
      %19 = dma.hbm_to_vmem [thread:$0]  %s0, 128, %s17, [#allocation3]
    $region5: #{forward.1} parent=1 // pred_fallthru
      _
    // Predicated region
    $region6: #{forward.1} parent=1 // pred_check
      _
    $region7: #{forward.1} parent=1 // pred_check_branch
      %21 = sbr.rel (0) target = $region9
    $region8: #{forward.1} parent=1 // pred_region
      %s23 = ssub.s32 6784, 6784
      %24 = vsyncadd [#allocation6], %s23
      %s25 = sshll.u32 [#allocation5], 4
      %s26 = int_to_ptr.vmem [resolvable:$true] %s25
      %31 = dma.hbm_to_vmem [thread:$0]  %s1, 6784, %s26, [#allocation6], 128, 128, 8
    $region9: #{forward.1} parent=1 // pred_fallthru
      _
    // Predicated region
    $region10: #{forward.1} parent=1 // pred_check
      _
    $region11: #{forward.1} parent=1 // pred_check_branch
      %33 = sbr.rel (0) target = $region13
    $region12: #{forward.1} parent=1 // pred_region
      %34 = dma.done [#allocation3], 128
    $region13: #{forward.1} parent=1 // pred_fallthru
      _
    // Predicated region
    $region14: #{forward.1} parent=1 // pred_check
      _
    $region15: #{forward.1} parent=1 // pred_check_branch
      %36 = sbr.rel (0) target = $region17
    $region16: #{forward.1} parent=1 // pred_region
      %37 = dma.done [#allocation6], 6784
    $region17: #{forward.1} parent=1 // pred_fallthru
      _
    %v38 = vld [vmem:[#allocation2] sm:$0xff]
    %v39 = vld [vmem:[#allocation5] sm:$0x1]
    %v40 = vld [vmem:[#allocation5 + $0x1] sm:$0x1]
    %v41 = vld [vmem:[#allocation5 + $0x2] sm:$0x1]
    %v42 = vld [vmem:[#allocation5 + $0x3] sm:$0x1]
    %v43 = vld [vmem:[#allocation5 + $0x8] sm:$0xff]
    %v44 = vld [vmem:[#allocation5 + $0x10] sm:$0xff]
    %v45 = vld [vmem:[#allocation5 + $0x18] sm:$0xff]
    %v46 = vld [vmem:[#allocation5 + $0x20] sm:$0xff]
    %v47 = vlaneseq
    %v48 = vshrl.u32 %v47, 7
    %v49 = vsub.s32 0, %v48
    %v50 = vrot.slane %v39, %v49
    %vm51 = vcmask 261120
    %v53 = vsel %vm51, %v38, 0
    %55 = vmatprep.subr.mxu0 0.0
    %56 = vmatpush1.msra.mxu0 %v43
    %57 = vmatprep.subr.mxu0 0.0
    %58 = vmatpush1.msra.mxu0 %v44
    %59 = vmatprep.subr.mxu0 0.0
    %60 = vmatpush1.msra.mxu0 %v45
    %61 = vmatprep.subr.mxu0 0.0
    %62 = vmatpush1.msra.mxu0 %v46
    %63 = vmatprep.subr.mxu0 0.0
    %64 = vmatpush1.msra.mxu0 0.0
    %65 = vmatprep.subr.mxu0 0.0
    %66 = vmatpush1.msra.mxu0 0.0
    %67 = vmatprep.subr.mxu0 0.0
    %68 = vmatpush1.msra.mxu0 0.0
    %69 = vmatprep.subr.mxu0 0.0
    %70 = vmatpush1.msra.mxu0 0.0
    %71 = vmatprep.subr.mxu0 0.0
    %72 = vmatpush1.msra.mxu0 0.0
    %73 = vmatprep.subr.mxu0 0.0
    %74 = vmatpush1.msra.mxu0 0.0
    %75 = vmatprep.subr.mxu0 0.0
    %76 = vmatpush1.msra.mxu0 0.0
    %77 = vmatprep.subr.mxu0 0.0
    %78 = vmatpush1.msra.mxu0 0.0
    %79 = vmatprep.subr.mxu0 0.0
    %80 = vmatpush1.msra.mxu0 0.0
    %81 = vmatprep.subr.mxu0 0.0
    %82 = vmatpush1.msra.mxu0 0.0
    %83 = vmatprep.subr.mxu0 0.0
    %84 = vmatpush1.msra.mxu0 0.0
    %85 = vmatprep.subr.mxu0 0.0
    %86 = vmatpush1.msra.mxu0 0.0
    %87 = vmatprep.subr.mxu0 0.0
    %88 = vmatpush1.msra.mxu0 0.0
    %89 = vmatprep.subr.mxu0 0.0
    %90 = vmatpush1.msra.mxu0 0.0
    %91 = vmatprep.subr.mxu0 0.0
    %92 = vmatpush1.msra.mxu0 0.0
    %93 = vmatprep.subr.mxu0 0.0
    %94 = vmatpush1.msra.mxu0 0.0
    %95 = vmatprep.subr.mxu0 0.0
    %96 = vmatpush1.msra.mxu0 0.0
    %97 = vmatprep.subr.mxu0 0.0
    %98 = vmatpush1.msra.mxu0 0.0
    %99 = vmatprep.subr.mxu0 0.0
    %100 = vmatpush1.msra.mxu0 0.0
    %101 = vmatprep.subr.mxu0 0.0
    %102 = vmatpush1.msra.mxu0 0.0
    %103 = vmatprep.subr.mxu0 0.0
    %104 = vmatpush1.msra.mxu0 0.0
    %105 = vmatprep.subr.mxu0 0.0
    %106 = vmatpush1.msra.mxu0 0.0
    %107 = vmatprep.subr.mxu0 0.0
    %108 = vmatpush1.msra.mxu0 0.0
    %109 = vmatprep.subr.mxu0 0.0
    %110 = vmatpush1.msra.mxu0 0.0
    %111 = vmatprep.subr.mxu0 0.0
    %112 = vmatpush1.msra.mxu0 0.0
    %113 = vmatprep.subr.mxu0 0.0
    %114 = vmatpush1.msra.mxu0 0.0
    %115 = vmatprep.subr.mxu0 0.0
    %116 = vmatpush1.msra.mxu0 0.0
    %117 = vmatprep.subr.mxu0 0.0
    %118 = vmatpush1.msra.mxu0 0.0
    %119 = vmatprep.mubr.f32.mxu0 0.0
    %120 = vmatmul.mubr.f32.gmra.mrb[0].mxu0 %v53
    %v121 = vpop.f32.mrb[0].mxu0
    %v122 = vadd.f32 %v50, %v121
    %v123 = vpop.f32.mrb[0].mxu0
    %124 = vdwg.mxu0
    %v125 = vmax.f32 %v122, 0.0
    %v126 = vld [vmem:[#allocation5 + $0x28] sm:$0xff]
    %v127 = vld [vmem:[#allocation5 + $0x30] sm:$0xff]
    %v128 = vld [vmem:[#allocation5 + $0x38] sm:$0xff]
    %v129 = vld [vmem:[#allocation5 + $0x40] sm:$0xff]
    %v130 = vld [vmem:[#allocation5 + $0x48] sm:$0xff]
    %v131 = vld [vmem:[#allocation5 + $0x50] sm:$0xff]
    %v132 = vld [vmem:[#allocation5 + $0x58] sm:$0xff]
    %v133 = vld [vmem:[#allocation5 + $0x60] sm:$0xff]
    %v134 = vld [vmem:[#allocation5 + $0x68] sm:$0xff]
    %v135 = vld [vmem:[#allocation5 + $0x70] sm:$0xff]
    %v136 = vld [vmem:[#allocation5 + $0x78] sm:$0xff]
    %v137 = vld [vmem:[#allocation5 + $0x80] sm:$0xff]
    %v138 = vld [vmem:[#allocation5 + $0x88] sm:$0xff]
    %v139 = vld [vmem:[#allocation5 + $0x90] sm:$0xff]
    %v140 = vld [vmem:[#allocation5 + $0x98] sm:$0xff]
    %v141 = vld [vmem:[#allocation5 + $0xa0] sm:$0xff]
    %v142 = vlaneseq
    %v143 = vshrl.u32 %v142, 7
    %v144 = vsub.s32 0, %v143
    %v145 = vrot.slane %v40, %v144
    %146 = vmatprep.subr.mxu0 0.0
    %147 = vmatpush1.msra.mxu0 %v126
    %148 = vmatprep.subr.mxu0 0.0
    %149 = vmatpush1.msra.mxu0 %v127
    %150 = vmatprep.subr.mxu0 0.0
    %151 = vmatpush1.msra.mxu0 %v128
    %152 = vmatprep.subr.mxu0 0.0
    %153 = vmatpush1.msra.mxu0 %v129
    %154 = vmatprep.subr.mxu0 0.0
    %155 = vmatpush1.msra.mxu0 %v130
    %156 = vmatprep.subr.mxu0 0.0
    %157 = vmatpush1.msra.mxu0 %v131
    %158 = vmatprep.subr.mxu0 0.0
    %159 = vmatpush1.msra.mxu0 %v132
    %160 = vmatprep.subr.mxu0 0.0
    %161 = vmatpush1.msra.mxu0 %v133
    %162 = vmatprep.subr.mxu0 0.0
    %163 = vmatpush1.msra.mxu0 %v134
    %164 = vmatprep.subr.mxu0 0.0
    %165 = vmatpush1.msra.mxu0 %v135
    %166 = vmatprep.subr.mxu0 0.0
    %167 = vmatpush1.msra.mxu0 %v136
    %168 = vmatprep.subr.mxu0 0.0
    %169 = vmatpush1.msra.mxu0 %v137
    %170 = vmatprep.subr.mxu0 0.0
    %171 = vmatpush1.msra.mxu0 %v138
    %172 = vmatprep.subr.mxu0 0.0
    %173 = vmatpush1.msra.mxu0 %v139
    %174 = vmatprep.subr.mxu0 0.0
    %175 = vmatpush1.msra.mxu0 %v140
    %176 = vmatprep.subr.mxu0 0.0
    %177 = vmatpush1.msra.mxu0 %v141
    %178 = vmatprep.subr.mxu0 0.0
    %179 = vmatpush1.msra.mxu0 0.0
    %180 = vmatprep.subr.mxu0 0.0
    %181 = vmatpush1.msra.mxu0 0.0
    %182 = vmatprep.subr.mxu0 0.0
    %183 = vmatpush1.msra.mxu0 0.0
    %184 = vmatprep.subr.mxu0 0.0
    %185 = vmatpush1.msra.mxu0 0.0
    %186 = vmatprep.subr.mxu0 0.0
    %187 = vmatpush1.msra.mxu0 0.0
    %188 = vmatprep.subr.mxu0 0.0
    %189 = vmatpush1.msra.mxu0 0.0
    %190 = vmatprep.subr.mxu0 0.0
    %191 = vmatpush1.msra.mxu0 0.0
    %192 = vmatprep.subr.mxu0 0.0
    %193 = vmatpush1.msra.mxu0 0.0
    %194 = vmatprep.subr.mxu0 0.0
    %195 = vmatpush1.msra.mxu0 0.0
    %196 = vmatprep.subr.mxu0 0.0
    %197 = vmatpush1.msra.mxu0 0.0
    %198 = vmatprep.subr.mxu0 0.0
    %199 = vmatpush1.msra.mxu0 0.0
    %200 = vmatprep.subr.mxu0 0.0
    %201 = vmatpush1.msra.mxu0 0.0
    %202 = vmatprep.subr.mxu0 0.0
    %203 = vmatpush1.msra.mxu0 0.0
    %204 = vmatprep.subr.mxu0 0.0
    %205 = vmatpush1.msra.mxu0 0.0
    %206 = vmatprep.subr.mxu0 0.0
    %207 = vmatpush1.msra.mxu0 0.0
    %208 = vmatprep.subr.mxu0 0.0
    %209 = vmatpush1.msra.mxu0 0.0
    %210 = vmatprep.mubr.f32.mxu0 0.0
    %211 = vmatmul.mubr.f32.gmra.mrb[0].mxu0 %v125
    %v212 = vpop.f32.mrb[0].mxu0
    %v213 = vadd.f32 %v145, %v212
    %v214 = vpop.f32.mrb[0].mxu0
    %215 = vdwg.mxu0
    %v216 = vmax.f32 %v213, 0.0
    %v217 = vld [vmem:[#allocation5 + $0xa8] sm:$0xff]
    %v218 = vld [vmem:[#allocation5 + $0xb0] sm:$0xff]
    %v219 = vld [vmem:[#allocation5 + $0xb8] sm:$0xff]
    %v220 = vld [vmem:[#allocation5 + $0xc0] sm:$0xff]
    %v221 = vld [vmem:[#allocation5 + $0xc8] sm:$0xff]
    %v222 = vld [vmem:[#allocation5 + $0xd0] sm:$0xff]
    %v223 = vld [vmem:[#allocation5 + $0xd8] sm:$0xff]
    %v224 = vld [vmem:[#allocation5 + $0xe0] sm:$0xff]
    %v225 = vld [vmem:[#allocation5 + $0xe8] sm:$0xff]
    %v226 = vld [vmem:[#allocation5 + $0xf0] sm:$0xff]
    %v227 = vld [vmem:[#allocation5 + $0xf8] sm:$0xff]
    %v228 = vld [vmem:[#allocation5 + $0x100] sm:$0xff]
    %v229 = vld [vmem:[#allocation5 + $0x108] sm:$0xff]
    %v230 = vld [vmem:[#allocation5 + $0x110] sm:$0xff]
    %v231 = vld [vmem:[#allocation5 + $0x118] sm:$0xff]
    %v232 = vld [vmem:[#allocation5 + $0x120] sm:$0xff]
    %v233 = vlaneseq
    %v234 = vshrl.u32 %v233, 7
    %v235 = vsub.s32 0, %v234
    %v236 = vrot.slane %v41, %v235
    %237 = vmatprep.subr.mxu0 0.0
    %238 = vmatpush1.msra.mxu0 %v217
    %239 = vmatprep.subr.mxu0 0.0
    %240 = vmatpush1.msra.mxu0 %v218
    %241 = vmatprep.subr.mxu0 0.0
    %242 = vmatpush1.msra.mxu0 %v219
    %243 = vmatprep.subr.mxu0 0.0
    %244 = vmatpush1.msra.mxu0 %v220
    %245 = vmatprep.subr.mxu0 0.0
    %246 = vmatpush1.msra.mxu0 %v221
    %247 = vmatprep.subr.mxu0 0.0
    %248 = vmatpush1.msra.mxu0 %v222
    %249 = vmatprep.subr.mxu0 0.0
    %250 = vmatpush1.msra.mxu0 %v223
    %251 = vmatprep.subr.mxu0 0.0
    %252 = vmatpush1.msra.mxu0 %v224
    %253 = vmatprep.subr.mxu0 0.0
    %254 = vmatpush1.msra.mxu0 %v225
    %255 = vmatprep.subr.mxu0 0.0
    %256 = vmatpush1.msra.mxu0 %v226
    %257 = vmatprep.subr.mxu0 0.0
    %258 = vmatpush1.msra.mxu0 %v227
    %259 = vmatprep.subr.mxu0 0.0
    %260 = vmatpush1.msra.mxu0 %v228
    %261 = vmatprep.subr.mxu0 0.0
    %262 = vmatpush1.msra.mxu0 %v229
    %263 = vmatprep.subr.mxu0 0.0
    %264 = vmatpush1.msra.mxu0 %v230
    %265 = vmatprep.subr.mxu0 0.0
    %266 = vmatpush1.msra.mxu0 %v231
    %267 = vmatprep.subr.mxu0 0.0
    %268 = vmatpush1.msra.mxu0 %v232
    %269 = vmatprep.subr.mxu0 0.0
    %270 = vmatpush1.msra.mxu0 0.0
    %271 = vmatprep.subr.mxu0 0.0
    %272 = vmatpush1.msra.mxu0 0.0
    %273 = vmatprep.subr.mxu0 0.0
    %274 = vmatpush1.msra.mxu0 0.0
    %275 = vmatprep.subr.mxu0 0.0
    %276 = vmatpush1.msra.mxu0 0.0
    %277 = vmatprep.subr.mxu0 0.0
    %278 = vmatpush1.msra.mxu0 0.0
    %279 = vmatprep.subr.mxu0 0.0
    %280 = vmatpush1.msra.mxu0 0.0
    %281 = vmatprep.subr.mxu0 0.0
    %282 = vmatpush1.msra.mxu0 0.0
    %283 = vmatprep.subr.mxu0 0.0
    %284 = vmatpush1.msra.mxu0 0.0
    %285 = vmatprep.subr.mxu0 0.0
    %286 = vmatpush1.msra.mxu0 0.0
    %287 = vmatprep.subr.mxu0 0.0
    %288 = vmatpush1.msra.mxu0 0.0
    %289 = vmatprep.subr.mxu0 0.0
    %290 = vmatpush1.msra.mxu0 0.0
    %291 = vmatprep.subr.mxu0 0.0
    %292 = vmatpush1.msra.mxu0 0.0
    %293 = vmatprep.subr.mxu0 0.0
    %294 = vmatpush1.msra.mxu0 0.0
    %295 = vmatprep.subr.mxu0 0.0
    %296 = vmatpush1.msra.mxu0 0.0
    %297 = vmatprep.subr.mxu0 0.0
    %298 = vmatpush1.msra.mxu0 0.0
    %299 = vmatprep.subr.mxu0 0.0
    %300 = vmatpush1.msra.mxu0 0.0
    %301 = vmatprep.mubr.f32.mxu0 0.0
    %302 = vmatmul.mubr.f32.gmra.mrb[0].mxu0 %v216
    %v303 = vpop.f32.mrb[0].mxu0
    %v304 = vadd.f32 %v236, %v303
    %v305 = vpop.f32.mrb[0].mxu0
    %306 = vdwg.mxu0
    %v307 = vlaneseq
    %v308 = vand.u32 %v307, 127
    %vm309 = vcmp.ge.s32.totalorder %v308, 0
    %vm310 = vcmp.lt.s32.totalorder %v308, 4
    %vm311 = vmand %vm309, %vm310
    %v312 = vsel %vm311, 1, 0
    %vm313 = vcmp.eq.s32.totalorder %v312, 1
    %v314 = vsel %vm313, %v304, -inf
    %315 = vmax.xlane.f32.xlu0 %v314
    %v316 = vpop.xlane.xlu0 %315
    %v317 = vsel %vm313, %v316, 0.0
    %vm318 = vcmp.ge.s32.totalorder %v308, 4
    %vm319 = vcmp.lt.s32.totalorder %v308, 11
    %vm320 = vmand %vm318, %vm319
    %v321 = vsel %vm320, 1, 0
    %vm322 = vcmp.eq.s32.totalorder %v321, 1
    %v323 = vsel %vm322, %v304, -inf
    %324 = vmax.xlane.f32.xlu0 %v323
    %v325 = vpop.xlane.xlu0 %324
    %v326 = vsel %vm322, %v325, %v317
    %vm327 = vcmp.ge.s32.totalorder %v308, 11
    %vm328 = vcmp.lt.s32.totalorder %v308, 14
    %vm329 = vmand %vm327, %vm328
    %v330 = vsel %vm329, 1, 0
    %vm331 = vcmp.eq.s32.totalorder %v330, 1
    %v332 = vsel %vm331, %v304, -inf
    %333 = vmax.xlane.f32.xlu0 %v332
    %v334 = vpop.xlane.xlu0 %333
    %v335 = vsel %vm331, %v334, %v326
    %v336 = vsub.f32 %v304, %v335
    %v337 = vmul.f32 %v336, 1.442695
    %v338 = vpow.pop %v337
    %v339 = vsel %vm328, 1, 0
    %vm340 = vcmp.eq.s32.totalorder %v339, 1
    %v341 = vsel %vm340, %v338, 0.0
    %v342 = vld [vmem:[#allocation5 + $0x128] sm:$0xff]
    %v343 = vld [vmem:[#allocation5 + $0x130] sm:$0xff]
    %v344 = vld [vmem:[#allocation5 + $0x138] sm:$0xff]
    %v345 = vld [vmem:[#allocation5 + $0x140] sm:$0xff]
    %v346 = vld [vmem:[#allocation5 + $0x148] sm:$0xff]
    %v347 = vld [vmem:[#allocation5 + $0x150] sm:$0xff]
    %v348 = vld [vmem:[#allocation5 + $0x158] sm:$0xff]
    %v349 = vld [vmem:[#allocation5 + $0x160] sm:$0xff]
    %v350 = vld [vmem:[#allocation5 + $0x168] sm:$0xff]
    %v351 = vld [vmem:[#allocation5 + $0x170] sm:$0xff]
    %v352 = vld [vmem:[#allocation5 + $0x178] sm:$0xff]
    %v353 = vld [vmem:[#allocation5 + $0x180] sm:$0xff]
    %v354 = vld [vmem:[#allocation5 + $0x188] sm:$0xff]
    %v355 = vld [vmem:[#allocation5 + $0x190] sm:$0xff]
    %v356 = vld [vmem:[#allocation5 + $0x198] sm:$0xff]
    %v357 = vld [vmem:[#allocation5 + $0x1a0] sm:$0xff]
    %v358 = vlaneseq
    %v359 = vshrl.u32 %v358, 7
    %v360 = vsub.s32 0, %v359
    %v361 = vrot.slane %v42, %v360
    %362 = vmatprep.subr.mxu0 0.0
    %363 = vmatpush1.msra.mxu0 %v342
    %364 = vmatprep.subr.mxu0 0.0
    %365 = vmatpush1.msra.mxu0 %v343
    %366 = vmatprep.subr.mxu0 0.0
    %367 = vmatpush1.msra.mxu0 %v344
    %368 = vmatprep.subr.mxu0 0.0
    %369 = vmatpush1.msra.mxu0 %v345
    %370 = vmatprep.subr.mxu0 0.0
    %371 = vmatpush1.msra.mxu0 %v346
    %372 = vmatprep.subr.mxu0 0.0
    %373 = vmatpush1.msra.mxu0 %v347
    %374 = vmatprep.subr.mxu0 0.0
    %375 = vmatpush1.msra.mxu0 %v348
    %376 = vmatprep.subr.mxu0 0.0
    %377 = vmatpush1.msra.mxu0 %v349
    %378 = vmatprep.subr.mxu0 0.0
    %379 = vmatpush1.msra.mxu0 %v350
    %380 = vmatprep.subr.mxu0 0.0
    %381 = vmatpush1.msra.mxu0 %v351
    %382 = vmatprep.subr.mxu0 0.0
    %383 = vmatpush1.msra.mxu0 %v352
    %384 = vmatprep.subr.mxu0 0.0
    %385 = vmatpush1.msra.mxu0 %v353
    %386 = vmatprep.subr.mxu0 0.0
    %387 = vmatpush1.msra.mxu0 %v354
    %388 = vmatprep.subr.mxu0 0.0
    %389 = vmatpush1.msra.mxu0 %v355
    %390 = vmatprep.subr.mxu0 0.0
    %391 = vmatpush1.msra.mxu0 %v356
    %392 = vmatprep.subr.mxu0 0.0
    %393 = vmatpush1.msra.mxu0 %v357
    %394 = vmatprep.subr.mxu0 0.0
    %395 = vmatpush1.msra.mxu0 0.0
    %396 = vmatprep.subr.mxu0 0.0
    %397 = vmatpush1.msra.mxu0 0.0
    %398 = vmatprep.subr.mxu0 0.0
    %399 = vmatpush1.msra.mxu0 0.0
    %400 = vmatprep.subr.mxu0 0.0
    %401 = vmatpush1.msra.mxu0 0.0
    %402 = vmatprep.subr.mxu0 0.0
    %403 = vmatpush1.msra.mxu0 0.0
    %404 = vmatprep.subr.mxu0 0.0
    %405 = vmatpush1.msra.mxu0 0.0
    %406 = vmatprep.subr.mxu0 0.0
    %407 = vmatpush1.msra.mxu0 0.0
    %408 = vmatprep.subr.mxu0 0.0
    %409 = vmatpush1.msra.mxu0 0.0
    %410 = vmatprep.subr.mxu0 0.0
    %411 = vmatpush1.msra.mxu0 0.0
    %412 = vmatprep.subr.mxu0 0.0
    %413 = vmatpush1.msra.mxu0 0.0
    %414 = vmatprep.subr.mxu0 0.0
    %415 = vmatpush1.msra.mxu0 0.0
    %416 = vmatprep.subr.mxu0 0.0
    %417 = vmatpush1.msra.mxu0 0.0
    %418 = vmatprep.subr.mxu0 0.0
    %419 = vmatpush1.msra.mxu0 0.0
    %420 = vmatprep.subr.mxu0 0.0
    %421 = vmatpush1.msra.mxu0 0.0
    %422 = vmatprep.subr.mxu0 0.0
    %423 = vmatpush1.msra.mxu0 0.0
    %424 = vmatprep.subr.mxu0 0.0
    %425 = vmatpush1.msra.mxu0 0.0
    %426 = vmatprep.mubr.f32.mxu0 0.0
    %427 = vmatmul.mubr.f32.gmra.mrb[0].mxu0 %v341
    %v428 = vpop.f32.mrb[0].mxu0
    %v429 = vadd.f32 %v361, %v428
    %v430 = vpop.f32.mrb[0].mxu0
    %431 = vdwg.mxu0
    %v432 = vrcp.pop %v429
    %v433 = vmul.f32 %v341, %v432
    %434 = vst [vmem:[#allocation7] sm:$0xff] %v433
    // Predicated region
    $region18: #{forward.1} parent=1 // pred_check
      _
    $region19: #{forward.1} parent=1 // pred_check_branch
      %436 = sbr.rel (0) target = $region21
    $region20: #{forward.1} parent=1 // pred_region
      %s438 = ssub.s32 128, 128
      %439 = vsyncadd [#allocation4], %s438
      %s441 = sshll.u32 [#allocation7], 4
      %s442 = int_to_ptr.vmem [resolvable:$true] %s441
      %444 = dma.vmem_to_hbm [thread:$0]  %s442, 128, %s2, [#allocation4]
    $region21: #{forward.1} parent=1 // pred_fallthru
      _
    // Predicated region
    $region22: #{forward.1} parent=1 // pred_check
      _
    $region23: #{forward.1} parent=1 // pred_check_branch
      %446 = sbr.rel (0) target = $region25
    $region24: #{forward.1} parent=1 // pred_region
      %447 = dma.done [#allocation4], 128
    $region25: #{forward.1} parent=1 // pred_fallthru
      _
    %448 = vsyncpa [#allocation3], 1
    %449 = vsyncpa [#allocation6], 1
    %450 = vsyncpa [#allocation4], 1

</llo_original>
